<compile_context>
chip_gen: v5e
topology: v5e:2x2
jax: 0.10.0
libtpu: 0.0.40
codegen_flags: <defaults>
</compile_context>

<pallas_src>
import functools

import jax
import jax.numpy as jnp
from jax import lax
from jax.experimental import pallas as pl
from jax.experimental.pallas import tpu as pltpu

EPS = 1e-10
_LANES = 128                     # fixed lane width; pad is at most 127 elements
_TARGET_BLOCK_ROWS = 2048        # (2048, 128) f32 = 1 MiB per input per grid step
_CHUNK_ROWS = 256                # in-kernel sub-chunk rows (bounds VMEM temporaries)
_VMEM_LIMIT_BYTES = 40 * 1024 * 1024   # < v7x 64 MiB physical; >> v5e 16 MiB default


def _eac_kernel(params_ref, err_ref, conf_ref, out_ref, num_acc, den_acc, *,
                n, n_cols, block_rows, chunk_rows):
    i = pl.program_id(0)
    last = pl.num_programs(0) - 1

    error_th = params_ref[0]
    conf_th = params_ref[1]
    beta = params_ref[2]

    n_full_rows = n // n_cols      # fully-valid rows (static)
    rem_cols = n % n_cols          # valid lanes in the single ragged row (static)
    n_chunks = block_rows // chunk_rows

    @pl.when(i == 0)
    def _init():
        num_acc[...] = jnp.zeros_like(num_acc)
        den_acc[...] = jnp.zeros_like(den_acc)

    def chunk_sums(r0, masked):
        e = err_ref[pl.ds(r0, chunk_rows), :]     # (chunk_rows, n_cols) f32
        c = conf_ref[pl.ds(r0, chunk_rows), :]
        te = jnp.tanh(e)                          # EUP
        low = e <= error_th                       # low error (else high error)
        cert = c > conf_th                        # certain   (else uncertain)
        w_err = jnp.where(low, 1.0 - te, te)      # (1 - tanh e) low, tanh e high
        w_conf = jnp.where(cert, c, 1.0 - c)      # c certain, (1 - c) uncertain
        contrib = w_err * w_conf                  # per-element denominator term
        if masked:
            # Only traced on the final grid step: mask the zero-padded tail of
            # the ragged row and any garbage rows from the partial row-block.
            row_ids = lax.broadcasted_iota(jnp.int32, (chunk_rows, n_cols), 0)
            col_ids = lax.broadcasted_iota(jnp.int32, (chunk_rows, n_cols), 1)
            g_row = i * block_rows + r0 + row_ids
            valid = (g_row < n_full_rows) | ((g_row == n_full_rows) &
                                             (col_ids < rem_cols))
            contrib = jnp.where(valid, contrib, 0.0)
        # Numerator keeps LC (low & certain) and HU (high & uncertain): low == cert.
        num_contrib = jnp.where(low == cert, contrib, 0.0)
        # Sublane-reduce (XLU) before accumulating -> tiny accumulator RMW.
        return (jnp.sum(num_contrib, axis=0, keepdims=True),
                jnp.sum(contrib, axis=0, keepdims=True))

    def accumulate(masked):
        if n_chunks == 1:
            dn, dd = chunk_sums(0, masked)
            num_acc[...] += dn
            den_acc[...] += dd
        else:
            def body(ci, carry):
                nv, dv = carry
                r0 = pl.multiple_of(ci * chunk_rows, chunk_rows)
                dn, dd = chunk_sums(r0, masked)
                return nv + dn, dv + dd
            z = jnp.zeros((1, n_cols), jnp.float32)
            nv, dv = lax.fori_loop(0, n_chunks, body, (z, z))
            num_acc[...] += nv
            den_acc[...] += dv

    @pl.when(i != last)
    def _hot_path():                 # unmasked steady state
        accumulate(masked=False)

    @pl.when(i == last)
    def _tail_and_finalize():        # masked tail + finalize
        accumulate(masked=True)
        n_num = jnp.sum(num_acc[...], keepdims=True)   # (1, 1)
        n_den = jnp.sum(den_acc[...], keepdims=True)   # (1, 1)
        eac = n_num / (n_den + EPS)
        out_ref[...] = -1.0 * beta * jnp.log(eac + EPS)


def eac_loss_pallas(error, conf, error_th, conf_th, beta=1.0,
                    target_block_rows=_TARGET_BLOCK_ROWS):
    """EaC loss. error, conf: (N,) float-ish. Returns a 0-d float32 (like torch)."""
    error = jnp.asarray(error, jnp.float32).reshape(-1)
    conf = jnp.asarray(conf, jnp.float32).reshape(-1)
    n = int(error.shape[0])

    n_cols = _LANES
    n_rows = -(-n // n_cols)
    pad = n_rows * n_cols - n
    if pad:  # at most 127 elements; zeros are masked out on the final grid step
        error = jnp.pad(error, (0, pad))
        conf = jnp.pad(conf, (0, pad))
    err2 = error.reshape(n_rows, n_cols)
    conf2 = conf.reshape(n_rows, n_cols)

    target_block_rows = max(8, (int(target_block_rows) // 8) * 8)  # keep /8
    block_rows = min(target_block_rows, n_rows)  # either /8 or == full dim
    chunk_rows = _CHUNK_ROWS if block_rows % _CHUNK_ROWS == 0 else block_rows
    grid = (pl.cdiv(n_rows, block_rows),)

    # Thresholds / beta as SMEM scalars -> no recompile when they change.
    params = jnp.array([error_th, conf_th, beta], jnp.float32)

    kernel = functools.partial(
        _eac_kernel, n=n, n_cols=int(n_cols),
        block_rows=int(block_rows), chunk_rows=int(chunk_rows))

    out = pl.pallas_call(
        kernel,
        out_shape=jax.ShapeDtypeStruct((1, 1), jnp.float32),
        grid_spec=pltpu.PrefetchScalarGridSpec(
            num_scalar_prefetch=0,
            grid=grid,
            in_specs=[
                pl.BlockSpec(memory_space=pltpu.MemorySpace.SMEM),      # params
                pl.BlockSpec((block_rows, n_cols), lambda i: (i, 0)),   # error
                pl.BlockSpec((block_rows, n_cols), lambda i: (i, 0)),   # conf
            ],
            out_specs=pl.BlockSpec((1, 1), lambda i: (0, 0)),
            scratch_shapes=[pltpu.VMEM((1, n_cols), jnp.float32)] * 2,
        ),
        compiler_params=pltpu.CompilerParams(
            dimension_semantics=("arbitrary",),
            vmem_limit_bytes=_VMEM_LIMIT_BYTES),
    )(params, err2, conf2)

    # torch's normal path returns a 0-d tensor; mirror that.
    return out.reshape(())


def eac_loss_ref(error, conf, error_th, conf_th, beta=1.0):
    """Pure-JAX reference (masked-sum formulation of the torch module)."""
    error = jnp.asarray(error, jnp.float32)
    conf = jnp.asarray(conf, jnp.float32)
    te = jnp.tanh(error)
    low = error <= error_th
    high = ~low
    cert = conf > conf_th
    unc = ~cert
    n_lc = jnp.sum(jnp.where(low & cert, (1 - te) * conf, 0.0))
    n_lu = jnp.sum(jnp.where(low & unc, (1 - te) * (1 - conf), 0.0))
    n_hc = jnp.sum(jnp.where(high & cert, te * conf, 0.0))
    n_hu = jnp.sum(jnp.where(high & unc, te * (1 - conf), 0.0))
    eac = (n_lc + n_hu) / (n_lc + n_lu + n_hc + n_hu + EPS)
    return -1.0 * beta * jnp.log(eac + EPS)


if __name__ == "__main__":
    key = jax.random.PRNGKey(0)
    k1, k2, k3, k4, k5, k6 = jax.random.split(key, 6)

    # Case 1: small N, not a multiple of 128 (single grid step, masked tail).
    N1 = 200
    err1 = jax.random.uniform(k1, (N1,), jnp.float32) * 2.0   # errors in [0, 2)
    conf1 = jax.random.uniform(k2, (N1,), jnp.float32)        # conf in [0, 1)
    loss1 = jax.block_until_ready(eac_loss_pallas(err1, conf1, 1.0, 0.5, beta=1.0))
    ref1 = eac_loss_ref(err1, conf1, 1.0, 0.5, beta=1.0)
    assert jnp.allclose(loss1, ref1, atol=1e-4, rtol=1e-4), (loss1, ref1)

    # Case 2: multi-step grid (small block_rows) with a padded ragged row.
    N2 = 3000
    err2 = jax.random.uniform(k3, (N2,), jnp.float32) * 2.0
    conf2 = jax.random.uniform(k4, (N2,), jnp.float32)
    loss2 = jax.block_until_ready(
        eac_loss_pallas(err2, conf2, 1.0, 0.5, beta=1.0, target_block_rows=8))
    ref2 = eac_loss_ref(err2, conf2, 1.0, 0.5, beta=1.0)
    assert jnp.allclose(loss2, ref2, atol=1e-4, rtol=1e-4), (loss2, ref2)

    # Case 3: multi-step grid with a PARTIAL final row-block (garbage rows from
    # Pallas implicit block padding) + padded ragged row; beta != 1.
    N3 = 2600
    err3 = jax.random.uniform(k5, (N3,), jnp.float32) * 2.0
    conf3 = jax.random.uniform(k6, (N3,), jnp.float32)
    loss3 = jax.block_until_ready(
        eac_loss_pallas(err3, conf3, 0.8, 0.4, beta=2.0, target_block_rows=8))
    ref3 = eac_loss_ref(err3, conf3, 0.8, 0.4, beta=2.0)
    assert jnp.allclose(loss3, ref3, atol=1e-4, rtol=1e-4), (loss3, ref3)

    print("KERNEL_OK")
</pallas_src>

<mosaic_0001>
module attributes {stable_mosaic.version = 11 : i64} {
  func.func @_eac_kernel(%arg0: i32, %arg1: memref<3xf32, #tpu.memory_space<smem>>, %arg2: memref<2x128xf32, #tpu.memory_space<vmem>>, %arg3: memref<2x128xf32, #tpu.memory_space<vmem>>, %arg4: memref<1x1xf32, #tpu.memory_space<vmem>>, %arg5: memref<1x128xf32, #tpu.memory_space<vmem>>, %arg6: memref<1x128xf32, #tpu.memory_space<vmem>>) attributes {dimension_semantics = [#tpu.dimension_semantics<arbitrary>], iteration_bounds = array<i64: 1>, scalar_prefetch = 0 : i64, scratch_operands = 2 : i64, tpu.core_type = #tpu.core_type<tc>, window_params = [{transform_indices = @transform_0, window_bounds = array<i64: 3>}, {transform_indices = @transform_1, window_bounds = array<i64: 2, 128>}, {transform_indices = @transform_2, window_bounds = array<i64: 2, 128>}, {pipeline_mode = #tpu.pipeline_mode<synchronous>, transform_indices = @transform_3, window_bounds = array<i64: 1, 1>}]} {
    %c0 = arith.constant 0 : index
    %0 = memref.load %arg1[%c0] : memref<3xf32, #tpu.memory_space<smem>>
    %c1 = arith.constant 1 : index
    %1 = memref.load %arg1[%c1] : memref<3xf32, #tpu.memory_space<smem>>
    %c2 = arith.constant 2 : index
    %2 = memref.load %arg1[%c2] : memref<3xf32, #tpu.memory_space<smem>>
    %c0_i32 = arith.constant 0 : i32
    %3 = arith.cmpi eq, %arg0, %c0_i32 : i32
    %4 = arith.extui %3 : i1 to i32
    %c0_i32_0 = arith.constant 0 : i32
    %5 = arith.cmpi ne, %4, %c0_i32_0 : i32
    scf.if %5 {
      %cst = arith.constant 0.000000e+00 : f32
      %12 = vector.broadcast %cst : f32 to vector<1x128xf32>
      %c0_5 = arith.constant 0 : index
      %c0_6 = arith.constant 0 : index
      %13 = vector.load %arg5[%c0_5, %c0_6] : memref<1x128xf32, #tpu.memory_space<vmem>>, vector<1x128xf32>
      tpu.vector_store %arg5[%c0_5, %c0_6], %12 {strides = array<i32>} : memref<1x128xf32, #tpu.memory_space<vmem>>, vector<1x128xf32>,
      %cst_7 = arith.constant 0.000000e+00 : f32
      %14 = vector.broadcast %cst_7 : f32 to vector<1x128xf32>
      %c0_8 = arith.constant 0 : index
      %c0_9 = arith.constant 0 : index
      %15 = vector.load %arg6[%c0_8, %c0_9] : memref<1x128xf32, #tpu.memory_space<vmem>>, vector<1x128xf32>
      tpu.vector_store %arg6[%c0_8, %c0_9], %14 {strides = array<i32>} : memref<1x128xf32, #tpu.memory_space<vmem>>, vector<1x128xf32>,
    } else {
    }
    %c0_i32_1 = arith.constant 0 : i32
    %6 = arith.cmpi ne, %arg0, %c0_i32_1 : i32
    %7 = arith.extui %6 : i1 to i32
    %c0_i32_2 = arith.constant 0 : i32
    %8 = arith.cmpi ne, %7, %c0_i32_2 : i32
    scf.if %8 {
      %c0_5 = arith.constant 0 : index
      %c0_6 = arith.constant 0 : index
      %12 = vector.load %arg2[%c0_5, %c0_6] : memref<2x128xf32, #tpu.memory_space<vmem>>, vector<2x128xf32>
      %c0_7 = arith.constant 0 : index
      %c0_8 = arith.constant 0 : index
      %13 = vector.load %arg3[%c0_7, %c0_8] : memref<2x128xf32, #tpu.memory_space<vmem>>, vector<2x128xf32>
      %14 = math.tanh %12 : vector<2x128xf32>
      %15 = vector.broadcast %0 : f32 to vector<2x128xf32>
      %16 = arith.cmpf ole, %12, %15 : vector<2x128xf32>
      %17 = vector.broadcast %1 : f32 to vector<2x128xf32>
      %18 = arith.cmpf ogt, %13, %17 : vector<2x128xf32>
      %cst = arith.constant 1.000000e+00 : f32
      %19 = vector.broadcast %cst : f32 to vector<2x128xf32>
      %20 = arith.subf %19, %14 : vector<2x128xf32>
      %21 = arith.select %16, %20, %14 : vector<2x128xi1>, vector<2x128xf32>
      %cst_9 = arith.constant 1.000000e+00 : f32
      %22 = vector.broadcast %cst_9 : f32 to vector<2x128xf32>
      %23 = arith.subf %22, %13 : vector<2x128xf32>
      %24 = arith.select %18, %13, %23 : vector<2x128xi1>, vector<2x128xf32>
      %25 = arith.mulf %21, %24 : vector<2x128xf32>
      %26 = arith.xori %16, %18 : vector<2x128xi1>
      %cst_10 = arith.constant dense<true> : vector<2x128xi1>
      %27 = arith.xori %26, %cst_10 : vector<2x128xi1>
      %cst_11 = arith.constant 0.000000e+00 : f32
      %28 = vector.broadcast %cst_11 : f32 to vector<2x128xf32>
      %29 = arith.select %27, %25, %28 : vector<2x128xi1>, vector<2x128xf32>
      %cst_12 = arith.constant dense<0.000000e+00> : vector<128xf32>
      %30 = vector.multi_reduction <add>, %29, %cst_12 [0] : vector<2x128xf32> to vector<128xf32>
      %31 = vector.shape_cast %30 : vector<128xf32> to vector<1x128xf32>
      %cst_13 = arith.constant dense<0.000000e+00> : vector<128xf32>
      %32 = vector.multi_reduction <add>, %25, %cst_13 [0] : vector<2x128xf32> to vector<128xf32>
      %33 = vector.shape_cast %32 : vector<128xf32> to vector<1x128xf32>
      %c0_14 = arith.constant 0 : index
      %c0_15 = arith.constant 0 : index
      %34 = vector.load %arg5[%c0_14, %c0_15] : memref<1x128xf32, #tpu.memory_space<vmem>>, vector<1x128xf32>
      %35 = arith.addf %34, %31 : vector<1x128xf32>
      %c0_16 = arith.constant 0 : index
      %c0_17 = arith.constant 0 : index
      %36 = vector.load %arg5[%c0_16, %c0_17] : memref<1x128xf32, #tpu.memory_space<vmem>>, vector<1x128xf32>
      tpu.vector_store %arg5[%c0_16, %c0_17], %35 {strides = array<i32>} : memref<1x128xf32, #tpu.memory_space<vmem>>, vector<1x128xf32>,
      %c0_18 = arith.constant 0 : index
      %c0_19 = arith.constant 0 : index
      %37 = vector.load %arg6[%c0_18, %c0_19] : memref<1x128xf32, #tpu.memory_space<vmem>>, vector<1x128xf32>
      %38 = arith.addf %37, %33 : vector<1x128xf32>
      %c0_20 = arith.constant 0 : index
      %c0_21 = arith.constant 0 : index
      %39 = vector.load %arg6[%c0_20, %c0_21] : memref<1x128xf32, #tpu.memory_space<vmem>>, vector<1x128xf32>
      tpu.vector_store %arg6[%c0_20, %c0_21], %38 {strides = array<i32>} : memref<1x128xf32, #tpu.memory_space<vmem>>, vector<1x128xf32>,
    } else {
    }
    %c0_i32_3 = arith.constant 0 : i32
    %9 = arith.cmpi eq, %arg0, %c0_i32_3 : i32
    %10 = arith.extui %9 : i1 to i32
    %c0_i32_4 = arith.constant 0 : i32
    %11 = arith.cmpi ne, %10, %c0_i32_4 : i32
    scf.if %11 {
      %c0_5 = arith.constant 0 : index
      %c0_6 = arith.constant 0 : index
      %12 = vector.load %arg2[%c0_5, %c0_6] : memref<2x128xf32, #tpu.memory_space<vmem>>, vector<2x128xf32>
      %c0_7 = arith.constant 0 : index
      %c0_8 = arith.constant 0 : index
      %13 = vector.load %arg3[%c0_7, %c0_8] : memref<2x128xf32, #tpu.memory_space<vmem>>, vector<2x128xf32>
      %14 = math.tanh %12 : vector<2x128xf32>
      %15 = vector.broadcast %0 : f32 to vector<2x128xf32>
      %16 = arith.cmpf ole, %12, %15 : vector<2x128xf32>
      %17 = vector.broadcast %1 : f32 to vector<2x128xf32>
      %18 = arith.cmpf ogt, %13, %17 : vector<2x128xf32>
      %cst = arith.constant 1.000000e+00 : f32
      %19 = vector.broadcast %cst : f32 to vector<2x128xf32>
      %20 = arith.subf %19, %14 : vector<2x128xf32>
      %21 = arith.select %16, %20, %14 : vector<2x128xi1>, vector<2x128xf32>
      %cst_9 = arith.constant 1.000000e+00 : f32
      %22 = vector.broadcast %cst_9 : f32 to vector<2x128xf32>
      %23 = arith.subf %22, %13 : vector<2x128xf32>
      %24 = arith.select %18, %13, %23 : vector<2x128xi1>, vector<2x128xf32>
      %25 = arith.mulf %21, %24 : vector<2x128xf32>
      %26 = tpu.iota {dimensions = array<i32: 0>} : vector<2x128xi32>
      %27 = tpu.iota {dimensions = array<i32: 1>} : vector<2x128xi32>
      %c2_i32 = arith.constant 2 : i32
      %28 = arith.muli %arg0, %c2_i32 : i32
      %c0_i32_10 = arith.constant 0 : i32
      %29 = arith.addi %28, %c0_i32_10 : i32
      %30 = vector.broadcast %29 : i32 to vector<2x128xi32>
      %31 = arith.addi %30, %26 : vector<2x128xi32>
      %c1_i32 = arith.constant 1 : i32
      %32 = vector.broadcast %c1_i32 : i32 to vector<2x128xi32>
      %33 = arith.cmpi slt, %31, %32 : vector<2x128xi32>
      %c1_i32_11 = arith.constant 1 : i32
      %34 = vector.broadcast %c1_i32_11 : i32 to vector<2x128xi32>
      %35 = arith.cmpi eq, %31, %34 : vector<2x128xi32>
      %c72_i32 = arith.constant 72 : i32
      %36 = vector.broadcast %c72_i32 : i32 to vector<2x128xi32>
      %37 = arith.cmpi slt, %27, %36 : vector<2x128xi32>
      %38 = arith.andi %35, %37 : vector<2x128xi1>
      %39 = arith.ori %33, %38 : vector<2x128xi1>
      %cst_12 = arith.constant 0.000000e+00 : f32
      %40 = vector.broadcast %cst_12 : f32 to vector<2x128xf32>
      %41 = arith.select %39, %25, %40 : vector<2x128xi1>, vector<2x128xf32>
      %42 = arith.xori %16, %18 : vector<2x128xi1>
      %cst_13 = arith.constant dense<true> : vector<2x128xi1>
      %43 = arith.xori %42, %cst_13 : vector<2x128xi1>
      %cst_14 = arith.constant 0.000000e+00 : f32
      %44 = vector.broadcast %cst_14 : f32 to vector<2x128xf32>
      %45 = arith.select %43, %41, %44 : vector<2x128xi1>, vector<2x128xf32>
      %cst_15 = arith.constant dense<0.000000e+00> : vector<128xf32>
      %46 = vector.multi_reduction <add>, %45, %cst_15 [0] : vector<2x128xf32> to vector<128xf32>
      %47 = vector.shape_cast %46 : vector<128xf32> to vector<1x128xf32>
      %cst_16 = arith.constant dense<0.000000e+00> : vector<128xf32>
      %48 = vector.multi_reduction <add>, %41, %cst_16 [0] : vector<2x128xf32> to vector<128xf32>
      %49 = vector.shape_cast %48 : vector<128xf32> to vector<1x128xf32>
      %c0_17 = arith.constant 0 : index
      %c0_18 = arith.constant 0 : index
      %50 = vector.load %arg5[%c0_17, %c0_18] : memref<1x128xf32, #tpu.memory_space<vmem>>, vector<1x128xf32>
      %51 = arith.addf %50, %47 : vector<1x128xf32>
      %c0_19 = arith.constant 0 : index
      %c0_20 = arith.constant 0 : index
      %52 = vector.load %arg5[%c0_19, %c0_20] : memref<1x128xf32, #tpu.memory_space<vmem>>, vector<1x128xf32>
      tpu.vector_store %arg5[%c0_19, %c0_20], %51 {strides = array<i32>} : memref<1x128xf32, #tpu.memory_space<vmem>>, vector<1x128xf32>,
      %c0_21 = arith.constant 0 : index
      %c0_22 = arith.constant 0 : index
      %53 = vector.load %arg6[%c0_21, %c0_22] : memref<1x128xf32, #tpu.memory_space<vmem>>, vector<1x128xf32>
      %54 = arith.addf %53, %49 : vector<1x128xf32>
      %c0_23 = arith.constant 0 : index
      %c0_24 = arith.constant 0 : index
      %55 = vector.load %arg6[%c0_23, %c0_24] : memref<1x128xf32, #tpu.memory_space<vmem>>, vector<1x128xf32>
      tpu.vector_store %arg6[%c0_23, %c0_24], %54 {strides = array<i32>} : memref<1x128xf32, #tpu.memory_space<vmem>>, vector<1x128xf32>,
      %c0_25 = arith.constant 0 : index
      %c0_26 = arith.constant 0 : index
      %56 = vector.load %arg5[%c0_25, %c0_26] : memref<1x128xf32, #tpu.memory_space<vmem>>, vector<1x128xf32>
      %57 = vector.shape_cast %56 : vector<1x128xf32> to vector<1x1x128xf32>
      %cst_27 = arith.constant dense<0.000000e+00> : vector<1xf32>
      %58 = vector.multi_reduction <add>, %57, %cst_27 [1, 2] : vector<1x1x128xf32> to vector<1xf32>
      %59 = vector.shape_cast %58 : vector<1xf32> to vector<1x1x1xf32>
      %60 = vector.extract %59[0, 0, 0] : f32 from vector<1x1x1xf32>
      %61 = vector.broadcast %60 : f32 to vector<1x1xf32>
      %c0_28 = arith.constant 0 : index
      %c0_29 = arith.constant 0 : index
      %62 = vector.load %arg6[%c0_28, %c0_29] : memref<1x128xf32, #tpu.memory_space<vmem>>, vector<1x128xf32>
      %63 = vector.shape_cast %62 : vector<1x128xf32> to vector<1x1x128xf32>
      %cst_30 = arith.constant dense<0.000000e+00> : vector<1xf32>
      %64 = vector.multi_reduction <add>, %63, %cst_30 [1, 2] : vector<1x1x128xf32> to vector<1xf32>
      %65 = vector.shape_cast %64 : vector<1xf32> to vector<1x1x1xf32>
      %66 = vector.extract %65[0, 0, 0] : f32 from vector<1x1x1xf32>
      %67 = vector.broadcast %66 : f32 to vector<1x1xf32>
      %cst_31 = arith.constant 1.000000e-10 : f32
      %68 = vector.broadcast %cst_31 : f32 to vector<1x1xf32>
      %69 = arith.addf %67, %68 : vector<1x1xf32>
      %70 = arith.divf %61, %69 : vector<1x1xf32>
      %cst_32 = arith.constant -1.000000e+00 : f32
      %71 = arith.mulf %cst_32, %2 : f32
      %cst_33 = arith.constant 1.000000e-10 : f32
      %72 = vector.broadcast %cst_33 : f32 to vector<1x1xf32>
      %73 = arith.addf %70, %72 : vector<1x1xf32>
      %74 = math.log %73 : vector<1x1xf32>
      %75 = vector.broadcast %71 : f32 to vector<1x1xf32>
      %76 = arith.mulf %75, %74 : vector<1x1xf32>
      %c0_34 = arith.constant 0 : index
      %c0_35 = arith.constant 0 : index
      %77 = vector.load %arg4[%c0_34, %c0_35] : memref<1x1xf32, #tpu.memory_space<vmem>>, vector<1x1xf32>
      tpu.vector_store %arg4[%c0_34, %c0_35], %76 {strides = array<i32>} : memref<1x1xf32, #tpu.memory_space<vmem>>, vector<1x1xf32>,
    } else {
    }
    return
  }
  func.func @transform_0(%arg0: i32) -> i32 {
    %c0_i32 = arith.constant 0 : i32
    %c0_i32_0 = arith.constant 0 : i32
    return %c0_i32 : i32
  }
  func.func @transform_1(%arg0: i32) -> (i32, i32) {
    %c0_i32 = arith.constant 0 : i32
    %c0_i32_0 = arith.constant 0 : i32
    return %arg0, %c0_i32 : i32, i32
  }
  func.func @transform_2(%arg0: i32) -> (i32, i32) {
    %c0_i32 = arith.constant 0 : i32
    %c0_i32_0 = arith.constant 0 : i32
    return %arg0, %c0_i32 : i32, i32
  }
  func.func @transform_3(%arg0: i32) -> (i32, i32) {
    %c0_i32 = arith.constant 0 : i32
    %c0_i32_0 = arith.constant 0 : i32
    %c0_i32_1 = arith.constant 0 : i32
    return %c0_i32, %c0_i32_0 : i32, i32
  }
}

</mosaic_0001>

<llo_original>
// kernel: tpu_custom_call.1
$region0: #{tpu_custom_call.1}
  #allocation0 [shape = 'u32[]', space=smem, size = 0x4, offset = 0x4, fixed_abs, tag = 'smem constant byte address 0x4 - core index']
  #allocation1 [shape = 'u32[72,128]{1,0:T(1,128)}', space=vmem, size = 0x9000, scoped, tag = 'internal scratch']
  #allocation2 [shape = 'f32[1,128]{1,0:T(1,128)}', space=vmem, size = 0x200, scoped, tag = 'scratch operand']
  #allocation3 [shape = 'f32[1,128]{1,0:T(1,128)}', space=vmem, size = 0x200, scoped, tag = 'scratch operand']
  %s0 = inlined_call_operand.hbm [shape: f32[3], index: 0, kind: input, shape index: {}]
  %s1 = inlined_call_operand.hbm [shape: f32[2,128], index: 1, kind: input, shape index: {}]
  %s2 = inlined_call_operand.hbm [shape: f32[2,128], index: 2, kind: input, shape index: {}]
  %s3 = inlined_call_operand.hbm [shape: f32[1,1], index: 3, kind: output, shape index: {}]
  %s4 = sld [smem:[#allocation0]]
  $region46: #{tpu_custom_call.1} parent=0
    _
  %s6 = ssub.s32 1, %s4
  %s7 = scalar_select 0, %s6, %s4
  $region1: #{tpu_custom_call.1} parent=0
    #allocation4 [shape = 'u8[512]{0}', space=smem, size = 0x200, scoped, tag = 'input window, operand 0, single buffered']
    #allocation5 [shape = 's32[1]{0}', space=sflag, size = 0x4, scoped, tag = 'scoped memory for tpu_custom_call.1']
    #allocation6 [shape = 's32[1]{0}', space=sflag, size = 0x4, scoped, tag = 'scoped memory for tpu_custom_call.1']
    #allocation7 [shape = 's32[1]{0}', space=sflag, size = 0x4, scoped, tag = 'scoped memory for tpu_custom_call.1']
    #allocation8 [shape = 'u8[1024]{0}', space=vmem, size = 0x400, scoped, tag = 'input window, operand 1, single buffered']
    #allocation9 [shape = 'u8[1024]{0}', space=vmem, size = 0x400, scoped, tag = 'input window, operand 2, single buffered']
    #allocation10 [shape = 's32[1]{0}', space=sflag, size = 0x4, scoped, tag = 'scoped memory for tpu_custom_call.1']
    #allocation11 [shape = 'u8[512]{0}', space=vmem, size = 0x400, scoped, tag = 'output window, operand 0, single buffered']
    %8 = vsyncpa [#allocation7], 0
    %9 = vsyncpa [#allocation5], 0
    %10 = vsyncpa [#allocation10], 0
    %11 = vsyncpa [#allocation6], 0
    // Predicated region
    $region2: #{tpu_custom_call.1} parent=1 // pred_check
      _
    $region3: #{tpu_custom_call.1} parent=1 // pred_check_branch
      %13 = sbr.rel (0) target = $region5
    $region4: #{tpu_custom_call.1} parent=1 // pred_region
      %15 = vsyncadd [#allocation7], 0
      %s17 = sshll.u32 %s0, 4
      %s18 = int_to_ptr.hbm [resolvable:$true] %s17
      %20 = dma.hbm_to_smem %s18, 16, [#allocation4], [#allocation7]
    $region5: #{tpu_custom_call.1} parent=1 // pred_fallthru
      _
    // Predicated region
    $region6: #{tpu_custom_call.1} parent=1 // pred_check
      _
    $region7: #{tpu_custom_call.1} parent=1 // pred_check_branch
      %22 = sbr.rel (0) target = $region9
    $region8: #{tpu_custom_call.1} parent=1 // pred_region
      %24 = vsyncadd [#allocation5], 0
      %s26 = sshll.u32 %s1, 4
      %s27 = int_to_ptr.hbm [resolvable:$true] %s26
      %s28 = sshll.u32 [#allocation8], 4
      %s29 = int_to_ptr.vmem [resolvable:$true] %s28
      %31 = dma.hbm_to_vmem [thread:$0]  %s27, 32, %s29, [#allocation5]
    $region9: #{tpu_custom_call.1} parent=1 // pred_fallthru
      _
    // Predicated region
    $region10: #{tpu_custom_call.1} parent=1 // pred_check
      _
    $region11: #{tpu_custom_call.1} parent=1 // pred_check_branch
      %33 = sbr.rel (0) target = $region13
    $region12: #{tpu_custom_call.1} parent=1 // pred_region
      %35 = vsyncadd [#allocation10], 0
      %s37 = sshll.u32 %s2, 4
      %s38 = int_to_ptr.hbm [resolvable:$true] %s37
      %s39 = sshll.u32 [#allocation9], 4
      %s40 = int_to_ptr.vmem [resolvable:$true] %s39
      %42 = dma.hbm_to_vmem [thread:$0]  %s38, 32, %s40, [#allocation10]
    $region13: #{tpu_custom_call.1} parent=1 // pred_fallthru
      _
    // Predicated region
    $region14: #{tpu_custom_call.1} parent=1 // pred_check
      _
    $region15: #{tpu_custom_call.1} parent=1 // pred_check_branch
      %44 = sbr.rel (0) target = $region17
    $region16: #{tpu_custom_call.1} parent=1 // pred_region
      %46 = dma.done [#allocation7], 16
    $region17: #{tpu_custom_call.1} parent=1 // pred_fallthru
      _
    // Predicated region
    $region18: #{tpu_custom_call.1} parent=1 // pred_check
      _
    $region19: #{tpu_custom_call.1} parent=1 // pred_check_branch
      %48 = sbr.rel (0) target = $region21
    $region20: #{tpu_custom_call.1} parent=1 // pred_region
      %50 = dma.done [#allocation5], 32
    $region21: #{tpu_custom_call.1} parent=1 // pred_fallthru
      _
    // Predicated region
    $region22: #{tpu_custom_call.1} parent=1 // pred_check
      _
    $region23: #{tpu_custom_call.1} parent=1 // pred_check_branch
      %52 = sbr.rel (0) target = $region25
    $region24: #{tpu_custom_call.1} parent=1 // pred_region
      %54 = dma.done [#allocation10], 32
    $region25: #{tpu_custom_call.1} parent=1 // pred_fallthru
      _
    %55 = sfence
    %s56 = sld [smem:[#allocation4]]
    %s57 = sld [smem:[#allocation4 + $0x1]]
    %s58 = sld [smem:[#allocation4 + $0x2]]
    %p59 = scmp.eq.s32.totalorder 0, 0
    // Predicated region
    $region26: #{tpu_custom_call.1} parent=1 // pred_check
      %p60 = pneg %p59
    $region27: #{tpu_custom_call.1} parent=1 // pred_check_branch
      %62 = sbr.rel (%p60) target = $region29
    $region28: #{tpu_custom_call.1} parent=1 // pred_region
      %63 = vst [vmem:[#allocation2] sm:$0x1] 0.0
      %64 = vst [vmem:[#allocation3] sm:$0x1] 0.0
    $region29: #{tpu_custom_call.1} parent=1 // pred_fallthru
      _
    %p65 = scmp.ne.s32.totalorder 0, 0
    // Predicated region
    $region30: #{tpu_custom_call.1} parent=1 // pred_check
      %p66 = pneg %p65
    $region31: #{tpu_custom_call.1} parent=1 // pred_check_branch
      %68 = sbr.rel (%p66) target = $region33
    $region32: #{tpu_custom_call.1} parent=1 // pred_region
      %v69 = vld [vmem:[#allocation8] sm:$0x3]
      %v70 = vld [vmem:[#allocation9] sm:$0x3]
      %v71 = vtanh.pop %v69
      %v72 = vstv %s56
      %vm73 = vcmp.le.f32.partialorder %v69, %v72
      %v74 = vstv %s57
      %vm75 = vcmp.gt.f32.partialorder %v70, %v74
      %v76 = vsub.f32 1.0, %v71
      %v77 = vsel %vm73, %v76, %v71
      %v78 = vsub.f32 1.0, %v70
      %v79 = vsel %vm75, %v70, %v78
      %v80 = vmul.f32 %v77, %v79
      %vm81 = vmxor %vm73, %vm75
      %vm82 = vmxor %vm81, 1
      %v83 = vsel %vm82, %v80, 0.0
      %vm84 = vcmask 1041408
      %v85 = vsel %vm84, %v83, 0.0
      %v86 = vrot.slane %v85, 4
      %v87 = vadd.f32 %v85, %v86
      %v88 = vrot.slane %v87, 2
      %v89 = vadd.f32 %v87, %v88
      %v90 = vrot.slane %v89, 1
      %v91 = vadd.f32 %v89, %v90
      %v92 = vsel %vm84, %v80, 0.0
      %v93 = vrot.slane %v92, 4
      %v94 = vadd.f32 %v92, %v93
      %v95 = vrot.slane %v94, 2
      %v96 = vadd.f32 %v94, %v95
      %v97 = vrot.slane %v96, 1
      %v98 = vadd.f32 %v96, %v97
      %v99 = vld [vmem:[#allocation2] sm:$0x1]
      %v100 = vadd.f32 %v99, %v91
      %101 = vst [vmem:[#allocation2] sm:$0x1] %v100
      %v102 = vld [vmem:[#allocation3] sm:$0x1]
      %v103 = vadd.f32 %v102, %v98
      %104 = vst [vmem:[#allocation3] sm:$0x1] %v103
    $region33: #{tpu_custom_call.1} parent=1 // pred_fallthru
      _
    // Predicated region
    $region34: #{tpu_custom_call.1} parent=1 // pred_check
      %p105 = pneg %p59
    $region35: #{tpu_custom_call.1} parent=1 // pred_check_branch
      %107 = sbr.rel (%p105) target = $region37
    $region36: #{tpu_custom_call.1} parent=1 // pred_region
      %v108 = vld [vmem:[#allocation8] sm:$0x3]
      %v109 = vld [vmem:[#allocation9] sm:$0x3]
      %v110 = vtanh.pop %v108
      %v111 = vstv %s56
      %vm112 = vcmp.le.f32.partialorder %v108, %v111
      %v113 = vstv %s57
      %vm114 = vcmp.gt.f32.partialorder %v109, %v113
      %v115 = vsub.f32 1.0, %v110
      %v116 = vsel %vm112, %v115, %v110
      %v117 = vsub.f32 1.0, %v109
      %v118 = vsel %vm114, %v109, %v117
      %v119 = vmul.f32 %v116, %v118
      %v120 = vlaneseq
      %v121 = vshrl.u32 %v120, 7
      %v122 = vlaneseq
      %v123 = vand.u32 %v122, 127
      %s124 = smul.u32 0, 2
      %v125 = vstv %s124
      %v126 = vadd.s32 %v125, %v121
      %vm127 = vcmp.lt.s32.totalorder %v126, 1
      %vm128 = vcmp.eq.s32.totalorder %v126, 1
      %vm129 = vcmp.lt.s32.totalorder %v123, 72
      %vm130 = vmand %vm128, %vm129
      %vm131 = vmor %vm127, %vm130
      %v132 = vsel %vm131, %v119, 0.0
      %vm133 = vmxor %vm112, %vm114
      %vm134 = vmxor %vm133, 1
      %v135 = vsel %vm134, %v132, 0.0
      %vm136 = vcmask 1041408
      %v137 = vsel %vm136, %v135, 0.0
      %v138 = vrot.slane %v137, 4
      %v139 = vadd.f32 %v137, %v138
      %v140 = vrot.slane %v139, 2
      %v141 = vadd.f32 %v139, %v140
      %v142 = vrot.slane %v141, 1
      %v143 = vadd.f32 %v141, %v142
      %v144 = vsel %vm136, %v132, 0.0
      %v145 = vrot.slane %v144, 4
      %v146 = vadd.f32 %v144, %v145
      %v147 = vrot.slane %v146, 2
      %v148 = vadd.f32 %v146, %v147
      %v149 = vrot.slane %v148, 1
      %v150 = vadd.f32 %v148, %v149
      %v151 = vld [vmem:[#allocation2] sm:$0x1]
      %v152 = vadd.f32 %v151, %v143
      %153 = vst [vmem:[#allocation2] sm:$0x1] %v152
      %v154 = vld [vmem:[#allocation3] sm:$0x1]
      %v155 = vadd.f32 %v154, %v150
      %156 = vst [vmem:[#allocation3] sm:$0x1] %v155
      %v157 = vld [vmem:[#allocation2] sm:$0x1]
      %vm158 = vcmask 1040384
      %v159 = vsel %vm158, %v157, 0.0
      %160 = vadd.xlane.f32.xlu0 %v159
      %v161 = vpop.xlane.xlu0 %160
      %v162 = vrot.slane %v161, 4
      %v163 = vadd.f32 %v161, %v162
      %v164 = vrot.slane %v163, 2
      %v165 = vadd.f32 %v163, %v164
      %v166 = vrot.slane %v165, 1
      %v167 = vadd.f32 %v165, %v166
      %s168 = vtos %v167
      %v169 = vstv %s168
      %v170 = vld [vmem:[#allocation3] sm:$0x1]
      %v171 = vsel %vm158, %v170, 0.0
      %172 = vadd.xlane.f32.xlu0 %v171
      %v173 = vpop.xlane.xlu0 %172
      %v174 = vrot.slane %v173, 4
      %v175 = vadd.f32 %v173, %v174
      %v176 = vrot.slane %v175, 2
      %v177 = vadd.f32 %v175, %v176
      %v178 = vrot.slane %v177, 1
      %v179 = vadd.f32 %v177, %v178
      %s180 = vtos %v179
      %v181 = vstv %s180
      %v182 = vadd.f32 %v181, 1e-10
      %v183 = vrcp.pop %v182
      %v184 = vmul.f32 %v182, %v183
      %v185 = vsub.f32 1.0, %v184
      %v186 = vmul.f32 %v183, %v185
      %v187 = vadd.f32 %v183, %v186
      %vm188 = vweird.f32 %v182
      %vm189 = vweird.f32 %v183
      %vm190 = vmor %vm188, %vm189
      %v191 = vsel %vm190, %v183, %v187
      %v192 = vand.u32 2147483647, %v182
      %vm193 = vcmp.eq.f32.partialorder %v192, 8.507059e+37
      %v194 = vand.u32 %v182, 2147483648
      %v195 = vor.u32 1.1754944e-38, %v194
      %v196 = vsel %vm193, %v195, %v191
      %v197 = vmul.f32 %v169, %v196
      %s198 = smul.f32 %s58, -1.0
      %v199 = vadd.f32 %v197, 1e-10
      %v200 = vlog2.pop %v199
      %v201 = vmul.f32 %v200, 0.6931472
      %v202 = vstv %s198
      %v203 = vmul.f32 %v202, %v201
      %vm204 = vcmask 0
      %205 = vst.msk [vmem:[#allocation11] sm:$0x1] %vm204, %v203
    $region37: #{tpu_custom_call.1} parent=1 // pred_fallthru
      _
    // Predicated region
    $region38: #{tpu_custom_call.1} parent=1 // pred_check
      _
    $region39: #{tpu_custom_call.1} parent=1 // pred_check_branch
      %207 = sbr.rel (0) target = $region41
    $region40: #{tpu_custom_call.1} parent=1 // pred_region
      %209 = vsyncadd [#allocation6], 0
      %s211 = sshll.u32 [#allocation11], 4
      %s212 = int_to_ptr.vmem [resolvable:$true] %s211
      %s213 = sshll.u32 %s3, 4
      %s214 = int_to_ptr.hbm [resolvable:$true] %s213
      %216 = dma.vmem_to_hbm [thread:$0]  %s212, 16, %s214, [#allocation6]
    $region41: #{tpu_custom_call.1} parent=1 // pred_fallthru
      _
    // Predicated region
    $region42: #{tpu_custom_call.1} parent=1 // pred_check
      _
    $region43: #{tpu_custom_call.1} parent=1 // pred_check_branch
      %218 = sbr.rel (0) target = $region45
    $region44: #{tpu_custom_call.1} parent=1 // pred_region
      %220 = dma.done [#allocation6], 16
    $region45: #{tpu_custom_call.1} parent=1 // pred_fallthru
      _
    %221 = vsyncpa [#allocation5], 1
    %222 = vsyncpa [#allocation10], 1
    %223 = vsyncpa [#allocation6], 1
    %224 = vsyncpa [#allocation7], 1

</llo_original>
